<compile_context>
chip_gen: v5e
topology: v5e:2x2
jax: 0.10.0
libtpu: 0.0.40
codegen_flags: <defaults>
</compile_context>

<pallas_src>
import functools

import jax
import jax.numpy as jnp
from jax.experimental import pallas as pl
from jax.experimental.pallas import tpu as pltpu


def _round_up(x: int, m: int) -> int:
    return pl.cdiv(x, m) * m


# ----------------------------------------------------------------------------
# Kernel
# ----------------------------------------------------------------------------
def parallel_block_kernel(x_ref, w_ref, b_ref, o_ref, *, dp: int):
    x = x_ref[...]                                            # [TM, D_in]
    # Single fused MXU matmul against the packed [D_in, 2*Dp] weight.
    h = jnp.dot(x, w_ref[...], preferred_element_type=jnp.float32) + b_ref[...]
    h1 = h[:, :dp]                                            # [TM, Dp]
    h2 = h[:, dp:]                                            # [TM, Dp]
    # (h1 * h2).clamp(min=0) — padded lanes are 0*0 -> 0 and sliced off later.
    o_ref[...] = jnp.maximum(h1 * h2, 0.0).astype(o_ref.dtype)


# ----------------------------------------------------------------------------
# One-time parameter packing (do NOT call per forward pass)
# ----------------------------------------------------------------------------
def prepare_params(w1, b1, w2, b2, dtype=jnp.float32):
    """Pack PyTorch-layout weights (w: [D_out, D_in], b: [D_out]) into a single
    lane-dense [D_in, 2*Dp] weight and [1, 2*Dp] bias (Dp = round_up(D_out, 128))."""
    d_out, d_in = w1.shape
    dp = _round_up(d_out, 128)
    w = jnp.zeros((d_in, 2 * dp), dtype)
    w = w.at[:, :d_out].set(jnp.asarray(w1, dtype).T)
    w = w.at[:, dp:dp + d_out].set(jnp.asarray(w2, dtype).T)
    b = jnp.zeros((1, 2 * dp), jnp.float32)
    b = b.at[0, :d_out].set(jnp.asarray(b1, jnp.float32))
    b = b.at[0, dp:dp + d_out].set(jnp.asarray(b2, jnp.float32))
    return w, b


# ----------------------------------------------------------------------------
# Wrapper
# ----------------------------------------------------------------------------
def parallel_block(x, w_packed, b_packed, d_out: int, *, tm_max: int = 512):
    """x: [N, D_in]; w_packed: [D_in, 2*Dp]; b_packed: [1, 2*Dp]."""
    N, D_in = x.shape
    two_dp = w_packed.shape[1]
    dp = two_dp // 2

    # Row tile: multiple of 8 sublanes, capped so big problems get a real grid.
    tm = min(tm_max, _round_up(max(N, 8), 8))
    n_pad = _round_up(N, tm)
    if n_pad != N:
        x = jnp.pad(x, ((0, n_pad - N), (0, 0)))
    grid = (n_pad // tm,)

    # VMEM budget: resident packed weight/bias + double-buffered x/out tiles
    # + f32 intermediate slab; 2x headroom, clamped under v7x's 64 MiB VMEM.
    in_is = jnp.dtype(x.dtype).itemsize
    w_is = jnp.dtype(w_packed.dtype).itemsize
    need = (2 * (tm * D_in * in_is + tm * dp * in_is)      # pipelined x / out
            + 2 * (D_in * two_dp * w_is + two_dp * 4)       # resident w / b
            + tm * two_dp * 4)                              # f32 h slab
    vmem_limit = int(min(max(2 * need, 16 << 20), 56 << 20))

    out = pl.pallas_call(
        functools.partial(parallel_block_kernel, dp=dp),
        out_shape=jax.ShapeDtypeStruct((n_pad, dp), x.dtype),
        grid=grid,
        in_specs=[
            pl.BlockSpec((tm, D_in), lambda i: (i, 0)),      # x row tile
            pl.BlockSpec((D_in, two_dp), lambda i: (0, 0)),  # packed W (resident)
            pl.BlockSpec((1, two_dp), lambda i: (0, 0)),     # packed bias (resident)
        ],
        out_specs=pl.BlockSpec((tm, dp), lambda i: (i, 0)),
        compiler_params=pltpu.CompilerParams(
            dimension_semantics=("parallel",),
            vmem_limit_bytes=vmem_limit,
        ),
    )(x, w_packed, b_packed)

    return out[:N, :d_out]


# ----------------------------------------------------------------------------
# Pure-JAX reference
# ----------------------------------------------------------------------------
def parallel_block_ref(x, w1, b1, w2, b2):
    h1 = x @ w1.T + b1
    h2 = x @ w2.T + b2
    return jnp.maximum(h1 * h2, 0.0)


if __name__ == "__main__":
    key = jax.random.PRNGKey(0)

    def make_case(key, N, D_in, D_out):
        kx, kw1, kb1, kw2, kb2 = jax.random.split(key, 5)
        bound = 1.0 / (D_in ** 0.5)
        x = jax.random.normal(kx, (N, D_in), dtype=jnp.float32)
        w1 = jax.random.uniform(kw1, (D_out, D_in), minval=-bound, maxval=bound,
                                dtype=jnp.float32)
        b1 = jax.random.uniform(kb1, (D_out,), minval=-bound, maxval=bound,
                                dtype=jnp.float32)
        w2 = jax.random.uniform(kw2, (D_out, D_in), minval=-bound, maxval=bound,
                                dtype=jnp.float32)
        b2 = jax.random.uniform(kb2, (D_out,), minval=-bound, maxval=bound,
                                dtype=jnp.float32)
        return x, w1, b1, w2, b2

    # Case 1: the original toy shape (single grid step).
    k1, k2 = jax.random.split(key)
    x, w1, b1, w2, b2 = make_case(k1, N=8, D_in=32, D_out=16)
    w_packed, b_packed = prepare_params(w1, b1, w2, b2)        # one-time prep
    out = parallel_block(x, w_packed, b_packed, d_out=16)
    jax.block_until_ready(out)
    ref = parallel_block_ref(x, w1, b1, w2, b2)
    assert out.shape == ref.shape
    assert jnp.allclose(out, ref, atol=1e-5, rtol=1e-5)

    # Case 2: exercises the row grid (3 tiles), row padding, and lane padding.
    x2, w1b, b1b, w2b, b2b = make_case(k2, N=160, D_in=64, D_out=40)
    wp2, bp2 = prepare_params(w1b, b1b, w2b, b2b)
    out2 = parallel_block(x2, wp2, bp2, d_out=40, tm_max=64)
    jax.block_until_ready(out2)
    ref2 = parallel_block_ref(x2, w1b, b1b, w2b, b2b)
    assert out2.shape == ref2.shape
    assert jnp.allclose(out2, ref2, atol=1e-5, rtol=1e-5)

    print("KERNEL_OK")
</pallas_src>

<mosaic_0001>
module attributes {stable_mosaic.version = 11 : i64} {
  func.func @parallel_block_kernel(%arg0: i32, %arg1: memref<8x32xf32, #tpu.memory_space<vmem>>, %arg2: memref<32x256xf32, #tpu.memory_space<vmem>>, %arg3: memref<1x256xf32, #tpu.memory_space<vmem>>, %arg4: memref<8x128xf32, #tpu.memory_space<vmem>>) attributes {dimension_semantics = [#tpu.dimension_semantics<parallel>], iteration_bounds = array<i64: 1>, scalar_prefetch = 0 : i64, scratch_operands = 0 : i64, tpu.core_type = #tpu.core_type<tc>, window_params = [{transform_indices = @transform_0, window_bounds = array<i64: 8, 32>}, {pipeline_mode = #tpu.pipeline_mode<synchronous>, transform_indices = @transform_1, window_bounds = array<i64: 32, 256>}, {pipeline_mode = #tpu.pipeline_mode<synchronous>, transform_indices = @transform_2, window_bounds = array<i64: 1, 256>}, {transform_indices = @transform_3, window_bounds = array<i64: 8, 128>}]} {
    %c0 = arith.constant 0 : index
    %c0_0 = arith.constant 0 : index
    %0 = vector.load %arg1[%c0, %c0_0] : memref<8x32xf32, #tpu.memory_space<vmem>>, vector<8x32xf32>
    %c0_1 = arith.constant 0 : index
    %c0_2 = arith.constant 0 : index
    %1 = vector.load %arg2[%c0_1, %c0_2] : memref<32x256xf32, #tpu.memory_space<vmem>>, vector<32x256xf32>
    %cst = arith.constant dense<0.000000e+00> : vector<8x256xf32>
    %2 = tpu.matmul %0, %1, %cst {dimension_numbers = #tpu.dot_dimension_numbers<[1], [0], [0], [1], [0, 0, 1, 1], [], []>} : vector<8x32xf32>, vector<32x256xf32>, vector<8x256xf32> -> vector<8x256xf32>
    %c0_3 = arith.constant 0 : index
    %c0_4 = arith.constant 0 : index
    %3 = vector.load %arg3[%c0_3, %c0_4] : memref<1x256xf32, #tpu.memory_space<vmem>>, vector<1x256xf32>
    %4 = vector.broadcast %3 : vector<1x256xf32> to vector<8x256xf32>
    %5 = arith.addf %2, %4 : vector<8x256xf32>
    %6 = vector.extract_strided_slice %5 {offsets = [0, 0], sizes = [8, 128], strides = [1, 1]} : vector<8x256xf32> to vector<8x128xf32>
    %7 = vector.extract_strided_slice %5 {offsets = [0, 128], sizes = [8, 128], strides = [1, 1]} : vector<8x256xf32> to vector<8x128xf32>
    %8 = arith.mulf %6, %7 : vector<8x128xf32>
    %cst_5 = arith.constant 0.000000e+00 : f32
    %9 = vector.broadcast %cst_5 : f32 to vector<8x128xf32>
    %10 = arith.maximumf %8, %9 : vector<8x128xf32>
    %c0_6 = arith.constant 0 : index
    %c0_7 = arith.constant 0 : index
    %11 = vector.load %arg4[%c0_6, %c0_7] : memref<8x128xf32, #tpu.memory_space<vmem>>, vector<8x128xf32>
    tpu.vector_store %arg4[%c0_6, %c0_7], %10 {strides = array<i32>} : memref<8x128xf32, #tpu.memory_space<vmem>>, vector<8x128xf32>,
    return
  }
  func.func @transform_0(%arg0: i32) -> (i32, i32) {
    %c0_i32 = arith.constant 0 : i32
    %c0_i32_0 = arith.constant 0 : i32
    return %arg0, %c0_i32 : i32, i32
  }
  func.func @transform_1(%arg0: i32) -> (i32, i32) {
    %c0_i32 = arith.constant 0 : i32
    %c0_i32_0 = arith.constant 0 : i32
    %c0_i32_1 = arith.constant 0 : i32
    return %c0_i32, %c0_i32_0 : i32, i32
  }
  func.func @transform_2(%arg0: i32) -> (i32, i32) {
    %c0_i32 = arith.constant 0 : i32
    %c0_i32_0 = arith.constant 0 : i32
    %c0_i32_1 = arith.constant 0 : i32
    return %c0_i32, %c0_i32_0 : i32, i32
  }
  func.func @transform_3(%arg0: i32) -> (i32, i32) {
    %c0_i32 = arith.constant 0 : i32
    %c0_i32_0 = arith.constant 0 : i32
    return %arg0, %c0_i32 : i32, i32
  }
}

</mosaic_0001>

<llo_original>
// kernel: tpu_custom_call.1
$region0: #{tpu_custom_call.1}
  #allocation0 [shape = 'u32[]', space=smem, size = 0x4, offset = 0x4, fixed_abs, tag = 'smem constant byte address 0x4 - core index']
  #allocation1 [shape = 'u32[72,128]{1,0:T(1,128)}', space=vmem, size = 0x9000, scoped, tag = 'internal scratch']
  %s0 = inlined_call_operand.hbm [shape: f32[8,32], index: 0, kind: input, shape index: {}]
  %s1 = inlined_call_operand.hbm [shape: f32[32,256], index: 1, kind: input, shape index: {}]
  %s2 = inlined_call_operand.hbm [shape: f32[1,256], index: 2, kind: input, shape index: {}]
  %s3 = inlined_call_operand.hbm [shape: f32[8,128], index: 3, kind: output, shape index: {}]
  %s4 = sld [smem:[#allocation0]]
  $region34: #{tpu_custom_call.1} parent=0
    _
  %s6 = ssub.s32 1, %s4
  %s7 = scalar_select 0, %s6, %s4
  $region1: #{tpu_custom_call.1} parent=0
    #allocation2 [shape = 'u8[4096]{0}', space=vmem, size = 0x1000, scoped, tag = 'input window, operand 0, single buffered']
    #allocation3 [shape = 's32[1]{0}', space=sflag, size = 0x4, scoped, tag = 'scoped memory for tpu_custom_call.1']
    #allocation4 [shape = 's32[1]{0}', space=sflag, size = 0x4, scoped, tag = 'scoped memory for tpu_custom_call.1']
    #allocation5 [shape = 'u8[32768]{0}', space=vmem, size = 0x8000, scoped, tag = 'input window, operand 1, single buffered']
    #allocation6 [shape = 's32[1]{0}', space=sflag, size = 0x4, scoped, tag = 'scoped memory for tpu_custom_call.1']
    #allocation7 [shape = 'u8[1024]{0}', space=vmem, size = 0x400, scoped, tag = 'input window, operand 2, single buffered']
    #allocation8 [shape = 'u8[4096]{0}', space=vmem, size = 0x1000, scoped, tag = 'output window, operand 0, single buffered']
    %8 = vsyncpa [#allocation3], 0
    %9 = vsyncpa [#allocation6], 0
    %10 = vsyncpa [#allocation4], 0
    // Predicated region
    $region2: #{tpu_custom_call.1} parent=1 // pred_check
      _
    $region3: #{tpu_custom_call.1} parent=1 // pred_check_branch
      %12 = sbr.rel (0) target = $region5
    $region4: #{tpu_custom_call.1} parent=1 // pred_region
      %14 = vsyncadd [#allocation3], 0
      %s16 = sshll.u32 %s0, 4
      %s17 = int_to_ptr.hbm [resolvable:$true] %s16
      %s18 = sshll.u32 [#allocation2], 4
      %s19 = int_to_ptr.vmem [resolvable:$true] %s18
      %21 = dma.hbm_to_vmem [thread:$0]  %s17, 128, %s19, [#allocation3]
    $region5: #{tpu_custom_call.1} parent=1 // pred_fallthru
      _
    // Predicated region
    $region6: #{tpu_custom_call.1} parent=1 // pred_check
      _
    $region7: #{tpu_custom_call.1} parent=1 // pred_check_branch
      %23 = sbr.rel (0) target = $region9
    $region8: #{tpu_custom_call.1} parent=1 // pred_region
      %25 = vsyncadd [#allocation6], 0
      %s26 = sshll.u32 %s1, 4
      %s27 = int_to_ptr.hbm [resolvable:$true] %s26
      %s28 = sshll.u32 [#allocation5], 4
      %s29 = int_to_ptr.vmem [resolvable:$true] %s28
      %34 = dma.hbm_to_vmem [thread:$0]  %s27, 1024, %s29, [#allocation6], 256, 256, 16
    $region9: #{tpu_custom_call.1} parent=1 // pred_fallthru
      _
    // Predicated region
    $region10: #{tpu_custom_call.1} parent=1 // pred_check
      _
    $region11: #{tpu_custom_call.1} parent=1 // pred_check_branch
      %36 = sbr.rel (0) target = $region13
    $region12: #{tpu_custom_call.1} parent=1 // pred_region
      %38 = vsyncadd [#allocation6], 0
      %s40 = sshll.u32 %s2, 4
      %s41 = int_to_ptr.hbm [resolvable:$true] %s40
      %s42 = sshll.u32 [#allocation7], 4
      %s43 = int_to_ptr.vmem [resolvable:$true] %s42
      %45 = dma.hbm_to_vmem [thread:$0]  %s41, 32, %s43, [#allocation6]
    $region13: #{tpu_custom_call.1} parent=1 // pred_fallthru
      _
    // Predicated region
    $region14: #{tpu_custom_call.1} parent=1 // pred_check
      _
    $region15: #{tpu_custom_call.1} parent=1 // pred_check_branch
      %47 = sbr.rel (0) target = $region17
    $region16: #{tpu_custom_call.1} parent=1 // pred_region
      %49 = dma.done [#allocation3], 128
    $region17: #{tpu_custom_call.1} parent=1 // pred_fallthru
      _
    // Predicated region
    $region18: #{tpu_custom_call.1} parent=1 // pred_check
      _
    $region19: #{tpu_custom_call.1} parent=1 // pred_check_branch
      %51 = sbr.rel (0) target = $region21
    $region20: #{tpu_custom_call.1} parent=1 // pred_region
      %53 = dma.done [#allocation6], 1024
    $region21: #{tpu_custom_call.1} parent=1 // pred_fallthru
      _
    // Predicated region
    $region22: #{tpu_custom_call.1} parent=1 // pred_check
      _
    $region23: #{tpu_custom_call.1} parent=1 // pred_check_branch
      %55 = sbr.rel (0) target = $region25
    $region24: #{tpu_custom_call.1} parent=1 // pred_region
      %57 = dma.done [#allocation6], 32
    $region25: #{tpu_custom_call.1} parent=1 // pred_fallthru
      _
    %v58 = vld [vmem:[#allocation2] sm:$0xff]
    %v59 = vld [vmem:[#allocation5] sm:$0xff]
    %v60 = vld [vmem:[#allocation5 + $0x8] sm:$0xff]
    %v61 = vld [vmem:[#allocation5 + $0x10] sm:$0xff]
    %v62 = vld [vmem:[#allocation5 + $0x18] sm:$0xff]
    %v63 = vld [vmem:[#allocation5 + $0x20] sm:$0xff]
    %v64 = vld [vmem:[#allocation5 + $0x28] sm:$0xff]
    %v65 = vld [vmem:[#allocation5 + $0x30] sm:$0xff]
    %v66 = vld [vmem:[#allocation5 + $0x38] sm:$0xff]
    %v67 = vld [vmem:[#allocation7] sm:$0x3]
    %v69 = vperm.slane %v67, 0
    %v70 = vperm.slane %v67, 1
    %vm73 = vcmask 261120
    %v75 = vsel %vm73, %v58, 0
    %77 = vmatpush.msra.mxu0 0.0
    %78 = vmatpush.msra.mxu0 0.0
    %79 = vmatpush.msra.mxu0 0.0
    %80 = vmatpush.msra.mxu0 0.0
    %81 = vmatpush.msra.mxu0 0.0
    %82 = vmatpush.msra.mxu0 0.0
    %83 = vmatpush.msra.mxu0 0.0
    %84 = vmatpush.msra.mxu0 0.0
    %85 = vmatpush.msra.mxu0 0.0
    %86 = vmatpush.msra.mxu0 0.0
    %87 = vmatpush.msra.mxu0 0.0
    %88 = vmatpush.msra.mxu0 0.0
    %89 = vmatpush.msra.mxu0 %v65
    %90 = vmatpush.msra.mxu0 %v63
    %91 = vmatpush.msra.mxu0 %v61
    %92 = vmatpush.msra.mxu0 %v59
    %93 = vmatmul.f32.gmra.mxu0 %v75
    %v94 = vpop.f32.mrf.mxu0
    %v95 = vadd.f32 %v69, %v94
    %96 = vdwg.mxu0
    %97 = vmatpush.msra.mxu0 0.0
    %98 = vmatpush.msra.mxu0 0.0
    %99 = vmatpush.msra.mxu0 0.0
    %100 = vmatpush.msra.mxu0 0.0
    %101 = vmatpush.msra.mxu0 0.0
    %102 = vmatpush.msra.mxu0 0.0
    %103 = vmatpush.msra.mxu0 0.0
    %104 = vmatpush.msra.mxu0 0.0
    %105 = vmatpush.msra.mxu0 0.0
    %106 = vmatpush.msra.mxu0 0.0
    %107 = vmatpush.msra.mxu0 0.0
    %108 = vmatpush.msra.mxu0 0.0
    %109 = vmatpush.msra.mxu0 %v66
    %110 = vmatpush.msra.mxu0 %v64
    %111 = vmatpush.msra.mxu0 %v62
    %112 = vmatpush.msra.mxu0 %v60
    %113 = vmatmul.f32.gmra.mxu0 %v75
    %v114 = vpop.f32.mrf.mxu0
    %v115 = vadd.f32 %v70, %v114
    %116 = vdwg.mxu0
    %v117 = vmul.f32 %v95, %v115
    %v118 = vmax.f32 %v117, 0.0
    %119 = vst [vmem:[#allocation8] sm:$0xff] %v118
    // Predicated region
    $region26: #{tpu_custom_call.1} parent=1 // pred_check
      _
    $region27: #{tpu_custom_call.1} parent=1 // pred_check_branch
      %121 = sbr.rel (0) target = $region29
    $region28: #{tpu_custom_call.1} parent=1 // pred_region
      %123 = vsyncadd [#allocation4], 0
      %s125 = sshll.u32 [#allocation8], 4
      %s126 = int_to_ptr.vmem [resolvable:$true] %s125
      %s127 = sshll.u32 %s3, 4
      %s128 = int_to_ptr.hbm [resolvable:$true] %s127
      %130 = dma.vmem_to_hbm [thread:$0]  %s126, 128, %s128, [#allocation4]
    $region29: #{tpu_custom_call.1} parent=1 // pred_fallthru
      _
    // Predicated region
    $region30: #{tpu_custom_call.1} parent=1 // pred_check
      _
    $region31: #{tpu_custom_call.1} parent=1 // pred_check_branch
      %132 = sbr.rel (0) target = $region33
    $region32: #{tpu_custom_call.1} parent=1 // pred_region
      %134 = dma.done [#allocation4], 128
    $region33: #{tpu_custom_call.1} parent=1 // pred_fallthru
      _
    %135 = vsyncpa [#allocation3], 1
    %136 = vsyncpa [#allocation6], 1
    %137 = vsyncpa [#allocation4], 1

</llo_original>
